<compile_context>
chip_gen: v5e
topology: v5e:2x2
jax: 0.10.0
libtpu: 0.0.40
codegen_flags: <defaults>
</compile_context>

<pallas_src>
import jax
import jax.numpy as jnp
from jax.experimental import pallas as pl
from jax.experimental.pallas import tpu as pltpu

_DEFAULT_TARGET_BLOCK_BYTES = 4 * 1024 * 1024


def _choose_tiles(B, S, H, itemsize, target_bytes):
    """Pick (tb, ts) so blocks are (8,128)-legal and ~target_bytes each."""
    elem_bytes = H * itemsize

    def seq_tile(rows):
        if S <= 8 or rows * S * elem_bytes <= target_bytes:
            return S
        ts = max(8, (target_bytes // (rows * elem_bytes) // 8) * 8)
        return S if ts >= S else ts

    ts = seq_tile(1)
    tb = max(1, target_bytes // (ts * elem_bytes))
    if tb >= B:
        tb = B
    elif tb >= 8:
        tb = (tb // 8) * 8          # multiple of 8 keeps the (TB, H) store legal
    else:
        tb = min(8, B)              # smallest legal tile; shrink ts to compensate
        ts = seq_tile(tb)
    return tb, ts


def _avg_pool3d(x, *, target_block_bytes=_DEFAULT_TARGET_BLOCK_BYTES):
    """mean over axis 1 of (B, S, H) -> (B, H), accumulated in float32."""
    B, S, H = x.shape
    itemsize = jnp.dtype(x.dtype).itemsize
    tb, ts = _choose_tiles(B, S, H, itemsize, target_block_bytes)

    inv_s = 1.0 / float(S)
    needs_mask = (S % ts) != 0

    def kernel(x_ref, o_ref, acc_ref):
        s_idx = pl.program_id(1)

        @pl.when(s_idx == 0)
        def _init():
            acc_ref[...] = jnp.zeros_like(acc_ref)

        x_blk = x_ref[...].astype(jnp.float32)
        if needs_mask:
            # Zero the padded sequence rows of the (partial) last block.
            valid = S - s_idx * ts
            pos = jax.lax.broadcasted_iota(jnp.int32, (1, ts, 1), 1)
            x_blk = jnp.where(pos < valid, x_blk, 0.0)
        acc_ref[...] += jnp.sum(x_blk, axis=1)

        @pl.when(s_idx == pl.num_programs(1) - 1)
        def _finish():
            o_ref[...] = (acc_ref[...] * inv_s).astype(o_ref.dtype)

    return pl.pallas_call(
        kernel,
        out_shape=jax.ShapeDtypeStruct((B, H), x.dtype),
        grid=(pl.cdiv(B, tb), pl.cdiv(S, ts)),
        in_specs=[pl.BlockSpec((tb, ts, H), lambda b, s: (b, s, 0))],
        out_specs=pl.BlockSpec((tb, H), lambda b, s: (b, 0)),
        scratch_shapes=[pltpu.VMEM((tb, H), jnp.float32)],
        compiler_params=pltpu.CompilerParams(
            dimension_semantics=("parallel", "arbitrary")),
    )(x)


def avg_pooling_pallas(hidden_state, dim: int = 1, *,
                       target_block_bytes=_DEFAULT_TARGET_BLOCK_BYTES):
    """Pallas implementation of AvgPooling.forward (dim=1)."""
    assert hidden_state.ndim in (2, 3), (
        "hidden state size should be (batch_size x num_seq x seq_len) or "
        "(num_seq x seq_len)")
    if dim != 1:
        # TODO(synk): dim != 1 variants are not implemented; module default is dim=1.
        raise NotImplementedError("only dim=1 is implemented")

    if hidden_state.ndim == 3:
        B, _, H = hidden_state.shape
        pooled = _avg_pool3d(hidden_state, target_block_bytes=target_block_bytes)
        return pooled.reshape(B, 1, H)      # torch.stack([pooled], dim=1)

    # 2D (N, L): mean over dim=1 -> (N,), stack at dim=1 -> (N, 1).
    # Present N on the lane axis for a dense layout: view as (1, L, N).
    N, _ = hidden_state.shape
    pooled = _avg_pool3d(hidden_state.T[None, :, :],
                         target_block_bytes=target_block_bytes)   # (1, N)
    return pooled.reshape(N, 1)


def avg_pooling_ref(hidden_state, dim: int = 1):
    """Pure-JAX reference reproducing the PyTorch forward (f32 accumulation)."""
    pooled = jnp.mean(hidden_state.astype(jnp.float32), axis=dim)
    return jnp.expand_dims(pooled, axis=dim).astype(hidden_state.dtype)


if __name__ == "__main__":
    key = jax.random.PRNGKey(0)

    # 1) Primary small test: (B, S, H) = (2, 8, 32), float32.
    x = jax.random.normal(key, (2, 8, 32), dtype=jnp.float32)
    out = jax.block_until_ready(avg_pooling_pallas(x))
    ref = avg_pooling_ref(x)
    assert out.shape == (2, 1, 32) and out.dtype == x.dtype
    assert jnp.allclose(out, ref, rtol=1e-6, atol=1e-6)

    # 2) Exercise the multi-block reduction + tail-masking path by forcing a
    #    tiny per-block byte budget (S=37 is not a multiple of the seq tile).
    x2 = jax.random.normal(jax.random.fold_in(key, 1), (2, 37, 32), dtype=jnp.float32)
    out2 = jax.block_until_ready(avg_pooling_pallas(x2, target_block_bytes=4096))
    ref2 = avg_pooling_ref(x2)
    assert jnp.allclose(out2, ref2, rtol=1e-5, atol=1e-5)

    # 3) bfloat16 input (f32 accumulation inside the kernel).
    x3 = jax.random.normal(jax.random.fold_in(key, 2), (4, 16, 128), dtype=jnp.bfloat16)
    out3 = jax.block_until_ready(avg_pooling_pallas(x3))
    ref3 = avg_pooling_ref(x3)
    assert out3.dtype == jnp.bfloat16
    assert jnp.allclose(out3.astype(jnp.float32), ref3.astype(jnp.float32),
                        rtol=2e-2, atol=2e-2)

    # 4) 2D input path: (N, L) -> (N, 1).
    x4 = jax.random.normal(jax.random.fold_in(key, 3), (8, 32), dtype=jnp.float32)
    out4 = jax.block_until_ready(avg_pooling_pallas(x4))
    ref4 = avg_pooling_ref(x4)
    assert out4.shape == (8, 1)
    assert jnp.allclose(out4, ref4, rtol=1e-6, atol=1e-6)

    print("KERNEL_OK")
</pallas_src>

<mosaic_0001>
module attributes {stable_mosaic.version = 11 : i64} {
  func.func @kernel(%arg0: i32, %arg1: i32, %arg2: memref<2x8x32xf32, #tpu.memory_space<vmem>>, %arg3: memref<2x32xf32, #tpu.memory_space<vmem>>, %arg4: memref<2x32xf32, #tpu.memory_space<vmem>>) attributes {dimension_semantics = [#tpu.dimension_semantics<parallel>, #tpu.dimension_semantics<arbitrary>], iteration_bounds = array<i64: 1, 1>, scalar_prefetch = 0 : i64, scratch_operands = 1 : i64, tpu.core_type = #tpu.core_type<tc>, window_params = [{transform_indices = @transform_0, window_bounds = array<i64: 2, 8, 32>}, {transform_indices = @transform_1, window_bounds = array<i64: 2, 32>}]} {
    %c0_i32 = arith.constant 0 : i32
    %0 = arith.cmpi eq, %arg1, %c0_i32 : i32
    %1 = arith.extui %0 : i1 to i32
    %c0_i32_0 = arith.constant 0 : i32
    %2 = arith.cmpi ne, %1, %c0_i32_0 : i32
    scf.if %2 {
      %cst_9 = arith.constant 0.000000e+00 : f32
      %11 = vector.broadcast %cst_9 : f32 to vector<2x32xf32>
      %c0_10 = arith.constant 0 : index
      %c0_11 = arith.constant 0 : index
      %12 = vector.load %arg4[%c0_10, %c0_11] : memref<2x32xf32, #tpu.memory_space<vmem>>, vector<2x32xf32>
      tpu.vector_store %arg4[%c0_10, %c0_11], %11 {strides = array<i32>} : memref<2x32xf32, #tpu.memory_space<vmem>>, vector<2x32xf32>,
    } else {
    }
    %c0 = arith.constant 0 : index
    %c0_1 = arith.constant 0 : index
    %c0_2 = arith.constant 0 : index
    %3 = vector.load %arg2[%c0, %c0_1, %c0_2] : memref<2x8x32xf32, #tpu.memory_space<vmem>>, vector<2x8x32xf32>
    %c0_3 = arith.constant 0 : index
    %c0_4 = arith.constant 0 : index
    %4 = vector.load %arg4[%c0_3, %c0_4] : memref<2x32xf32, #tpu.memory_space<vmem>>, vector<2x32xf32>
    %cst = arith.constant dense<0.000000e+00> : vector<2x32xf32>
    %5 = vector.multi_reduction <add>, %3, %cst [1] : vector<2x8x32xf32> to vector<2x32xf32>
    %6 = arith.addf %4, %5 : vector<2x32xf32>
    %c0_5 = arith.constant 0 : index
    %c0_6 = arith.constant 0 : index
    %7 = vector.load %arg4[%c0_5, %c0_6] : memref<2x32xf32, #tpu.memory_space<vmem>>, vector<2x32xf32>
    tpu.vector_store %arg4[%c0_5, %c0_6], %6 {strides = array<i32>} : memref<2x32xf32, #tpu.memory_space<vmem>>, vector<2x32xf32>,
    %c0_i32_7 = arith.constant 0 : i32
    %8 = arith.cmpi eq, %arg1, %c0_i32_7 : i32
    %9 = arith.extui %8 : i1 to i32
    %c0_i32_8 = arith.constant 0 : i32
    %10 = arith.cmpi ne, %9, %c0_i32_8 : i32
    scf.if %10 {
      %c0_9 = arith.constant 0 : index
      %c0_10 = arith.constant 0 : index
      %11 = vector.load %arg4[%c0_9, %c0_10] : memref<2x32xf32, #tpu.memory_space<vmem>>, vector<2x32xf32>
      %cst_11 = arith.constant 1.250000e-01 : f32
      %12 = vector.broadcast %cst_11 : f32 to vector<2x32xf32>
      %13 = arith.mulf %11, %12 : vector<2x32xf32>
      %c0_12 = arith.constant 0 : index
      %c0_13 = arith.constant 0 : index
      %14 = vector.load %arg3[%c0_12, %c0_13] : memref<2x32xf32, #tpu.memory_space<vmem>>, vector<2x32xf32>
      tpu.vector_store %arg3[%c0_12, %c0_13], %13 {strides = array<i32>} : memref<2x32xf32, #tpu.memory_space<vmem>>, vector<2x32xf32>,
    } else {
    }
    return
  }
  func.func @transform_0(%arg0: i32, %arg1: i32) -> (i32, i32, i32) {
    %c0_i32 = arith.constant 0 : i32
    %c0_i32_0 = arith.constant 0 : i32
    return %arg0, %arg1, %c0_i32 : i32, i32, i32
  }
  func.func @transform_1(%arg0: i32, %arg1: i32) -> (i32, i32) {
    %c0_i32 = arith.constant 0 : i32
    %c0_i32_0 = arith.constant 0 : i32
    return %arg0, %c0_i32 : i32, i32
  }
}

</mosaic_0001>

<llo_original>
// kernel: tpu_custom_call.1
$region0: #{tpu_custom_call.1}
  #allocation0 [shape = 'u32[]', space=smem, size = 0x4, offset = 0x4, fixed_abs, tag = 'smem constant byte address 0x4 - core index']
  #allocation1 [shape = 'u32[72,128]{1,0:T(1,128)}', space=vmem, size = 0x9000, scoped, tag = 'internal scratch']
  #allocation2 [shape = 'f32[2,32]{1,0:T(2,128)}', space=vmem, size = 0x400, scoped, tag = 'scratch operand']
  %s0 = inlined_call_operand.hbm [shape: f32[2,8,32], index: 0, kind: input, shape index: {}]
  %s1 = inlined_call_operand.hbm [shape: f32[2,32], index: 1, kind: output, shape index: {}]
  %s2 = sld [smem:[#allocation0]]
  $region26: #{tpu_custom_call.1} parent=0
    _
  %s4 = ssub.s32 1, %s2
  %s5 = scalar_select 0, %s4, %s2
  $region1: #{tpu_custom_call.1} parent=0
    #allocation3 [shape = 'u8[8192]{0}', space=vmem, size = 0x2000, scoped, tag = 'input window, operand 0, single buffered']
    #allocation4 [shape = 's32[1]{0}', space=sflag, size = 0x4, scoped, tag = 'scoped memory for tpu_custom_call.1']
    #allocation5 [shape = 's32[1]{0}', space=sflag, size = 0x4, scoped, tag = 'scoped memory for tpu_custom_call.1']
    #allocation6 [shape = 'u8[1024]{0}', space=vmem, size = 0x400, scoped, tag = 'output window, operand 0, single buffered']
    %6 = vsyncpa [#allocation4], 0
    %7 = vsyncpa [#allocation5], 0
    // Predicated region
    $region2: #{tpu_custom_call.1} parent=1 // pred_check
      _
    $region3: #{tpu_custom_call.1} parent=1 // pred_check_branch
      %9 = sbr.rel (0) target = $region5
    $region4: #{tpu_custom_call.1} parent=1 // pred_region
      %11 = vsyncadd [#allocation4], 0
      %s12 = sshll.u32 %s0, 4
      %s13 = int_to_ptr.hbm [resolvable:$true] %s12
      %s14 = sshll.u32 [#allocation3], 4
      %s15 = int_to_ptr.vmem [resolvable:$true] %s14
      %20 = dma.hbm_to_vmem [thread:$0]  %s13, 256, %s15, [#allocation4], 128, 128, 8
    $region5: #{tpu_custom_call.1} parent=1 // pred_fallthru
      _
    // Predicated region
    $region6: #{tpu_custom_call.1} parent=1 // pred_check
      _
    $region7: #{tpu_custom_call.1} parent=1 // pred_check_branch
      %22 = sbr.rel (0) target = $region9
    $region8: #{tpu_custom_call.1} parent=1 // pred_region
      %24 = dma.done [#allocation4], 256
    $region9: #{tpu_custom_call.1} parent=1 // pred_fallthru
      _
    %p25 = scmp.eq.s32.totalorder 0, 0
    // Predicated region
    $region10: #{tpu_custom_call.1} parent=1 // pred_check
      %p26 = pneg %p25
    $region11: #{tpu_custom_call.1} parent=1 // pred_check_branch
      %28 = sbr.rel (%p26) target = $region13
    $region12: #{tpu_custom_call.1} parent=1 // pred_region
      %vm29 = vcmask 254976
      %30 = vst.msk [vmem:[#allocation2] sm:$0x3] %vm29, 0.0
    $region13: #{tpu_custom_call.1} parent=1 // pred_fallthru
      _
    %v31 = vld [vmem:[#allocation3] sm:$0xff]
    %v32 = vld [vmem:[#allocation3 + $0x8] sm:$0xff]
    %v33 = vld [vmem:[#allocation2] sm:$0x3]
    %vm34 = vcmask 261120
    %v35 = vsel %vm34, %v31, 0.0
    %v36 = vrot.slane %v35, 4
    %v37 = vadd.f32 %v35, %v36
    %v38 = vrot.slane %v37, 2
    %v39 = vadd.f32 %v37, %v38
    %v40 = vrot.slane %v39, 1
    %v41 = vadd.f32 %v39, %v40
    %v42 = vsel %vm34, %v32, 0.0
    %v43 = vrot.slane %v42, 4
    %v44 = vadd.f32 %v42, %v43
    %v45 = vrot.slane %v44, 2
    %v46 = vadd.f32 %v44, %v45
    %v47 = vrot.slane %v46, 1
    %v48 = vadd.f32 %v46, %v47
    %vm51 = vcmask 1041409
    %v52 = vsel %vm51, %v48, %v41
    %v54 = vadd.f32 %v33, %v52
    %vm55 = vcmask 254976
    %56 = vst.msk [vmem:[#allocation2] sm:$0x3] %vm55, %v54
    // Predicated region
    $region14: #{tpu_custom_call.1} parent=1 // pred_check
      %p57 = pneg %p25
    $region15: #{tpu_custom_call.1} parent=1 // pred_check_branch
      %59 = sbr.rel (%p57) target = $region17
    $region16: #{tpu_custom_call.1} parent=1 // pred_region
      %v60 = vld [vmem:[#allocation2] sm:$0x3]
      %v61 = vmul.f32 %v60, 0.125
      %62 = vst.msk [vmem:[#allocation6] sm:$0x3] %vm55, %v61
    $region17: #{tpu_custom_call.1} parent=1 // pred_fallthru
      _
    // Predicated region
    $region18: #{tpu_custom_call.1} parent=1 // pred_check
      _
    $region19: #{tpu_custom_call.1} parent=1 // pred_check_branch
      %64 = sbr.rel (0) target = $region21
    $region20: #{tpu_custom_call.1} parent=1 // pred_region
      %66 = vsyncadd [#allocation5], 0
      %s68 = sshll.u32 [#allocation6], 4
      %s69 = int_to_ptr.vmem [resolvable:$true] %s68
      %s70 = sshll.u32 %s1, 4
      %s71 = int_to_ptr.hbm [resolvable:$true] %s70
      %73 = dma.vmem_to_hbm [thread:$0]  %s69, 32, %s71, [#allocation5]
    $region21: #{tpu_custom_call.1} parent=1 // pred_fallthru
      _
    // Predicated region
    $region22: #{tpu_custom_call.1} parent=1 // pred_check
      _
    $region23: #{tpu_custom_call.1} parent=1 // pred_check_branch
      %75 = sbr.rel (0) target = $region25
    $region24: #{tpu_custom_call.1} parent=1 // pred_region
      %77 = dma.done [#allocation5], 32
    $region25: #{tpu_custom_call.1} parent=1 // pred_fallthru
      _
    %78 = vsyncpa [#allocation4], 1
    %79 = vsyncpa [#allocation5], 1

</llo_original>
